<compile_context>
chip_gen: v7x
topology: tpu7x:2x2x1
jax: 0.10.0
libtpu: 0.0.40
codegen_flags: <defaults>
</compile_context>

<pallas_src>
import jax
import jax.numpy as jnp
from jax import lax
from jax.experimental import pallas as pl
from jax.experimental.pallas import tpu as pltpu


def _round_up(x, m):
    return ((x + m - 1) // m) * m


# ----------------------------------------------------------------------------
# Kernel
# ----------------------------------------------------------------------------
def edge_mlp_kernel(x_ref, w1_ref, b1_ref, w2_ref, b2_ref, o_ref):
    # x_ref : (tile_n, E)  edge-embedding tile (f32 or bf16)
    # w1_ref: (E, H)       first linear weight, [in, out] layout (same dtype as x)
    # b1_ref: (1, H)       first bias (f32)
    # w2_ref: (8, H)       second linear weight row, replicated on 8 sublanes (f32)
    # b2_ref: (1,)         second bias scalar, in SMEM (f32)
    # o_ref : (1, tile_n)  lane-dense output row of probabilities (f32)
    x = x_ref[...]

    # Linear 1 (MXU, f32 accumulation) + bias + ReLU.
    h = jnp.dot(x, w1_ref[...], preferred_element_type=jnp.float32)
    h = jnp.maximum(h + b1_ref[...], 0.0)                          # (tile_n, H) f32

    # Linear 2 as a trans-B contraction: contract H between the replicated w2
    # row and h, leaving the tile dimension on the MXU output-lane axis so the
    # lane-dense result needs no relayout.  This is the dimension_numbers form
    # of pl.dot(w2, h, trans_b=True) and lowers as a transposed-RHS MXU matmul.
    logits = lax.dot_general(
        w2_ref[...], h,
        dimension_numbers=(((1,), (1,)), ((), ())),
        preferred_element_type=jnp.float32,
    )                                                              # (8, tile_n)
    # Row 0 is the answer: w2 is replicated across all 8 sublanes by the wrapper
    # (keep that replication coupled to this slice).
    logit_row = logits[0:1, :] + b2_ref[0]                         # (1, tile_n)

    o_ref[...] = jax.nn.sigmoid(logit_row).astype(o_ref.dtype)


# ----------------------------------------------------------------------------
# Wrapper
# ----------------------------------------------------------------------------
def _choose_tile_n(n, max_tile):
    """Multiple-of-128 edge tile: as large as allowed, but keep >= 2 grid steps
    on large N so both v7x TensorCores get work."""
    max_tile = max(128, _round_up(max_tile, 128))
    if n > max_tile:
        return max_tile
    if n > 2048:                        # large enough that a 2-way split is free
        return min(_round_up(pl.cdiv(n, 2), 128), max_tile)
    return min(_round_up(n, 128), max_tile)


def edge_classifier_forward(edge_embeddings, params, *, tile_n=None, max_tile_n=8192):
    """edge_embeddings: [N, E] (f32; bf16 accepted if the upstream producer is bf16).
    Returns [N, 1] float32 probabilities (same math as the PyTorch module)."""
    w1, b1, w2, b2 = params["w1"], params["b1"], params["w2"], params["b2"]
    N, E = edge_embeddings.shape
    H = w1.shape[1]

    x = edge_embeddings
    # Match the (tiny) first-layer weight to the activation dtype.  Never cast x
    # here: an astype on x would add a full extra HBM pass over the dominant
    # operand.  Accumulation is f32 either way.
    if x.dtype != w1.dtype:
        w1 = w1.astype(x.dtype)

    if tile_n is None:
        tile_n = _choose_tile_n(N, max_tile_n)
    else:
        tile_n = max(128, _round_up(tile_n, 128))
    num_tiles = pl.cdiv(N, tile_n)      # ragged last block handled by Pallas

    # Replicate the 1xH second-layer weight row to 8 sublanes (tiny) so the
    # second matmul's LHS is an MXU-native (8, H) tile.
    w2_rep = jnp.broadcast_to(w2.astype(jnp.float32), (8, H))

    itemsize = jnp.dtype(x.dtype).itemsize
    # Rough per-step VMEM need: double-buffered x tile + f32 hidden + (8, tile_n)
    # logits + double-buffered output row + resident weights.
    vmem_est = (2 * tile_n * E * itemsize + tile_n * H * 4 + 8 * tile_n * 4
                + 2 * tile_n * 4 + E * H * itemsize + 16 * H * 4)
    compiler_kwargs = {"dimension_semantics": ("parallel",)}
    if vmem_est > (14 << 20):           # only above v5e's 16 MiB scoped default
        compiler_kwargs["vmem_limit_bytes"] = int(min(vmem_est + (4 << 20), 60 << 20))

    cost = pl.CostEstimate(
        flops=2 * N * H * (E + 8) + 4 * N * H,
        transcendentals=N,
        bytes_accessed=N * E * itemsize + N * 4 + E * H * itemsize + (8 * H + H + 1) * 4,
    )

    grid_spec = pl.GridSpec(
        grid=(num_tiles,),
        in_specs=[
            pl.BlockSpec((tile_n, E), lambda i: (i, 0)),           # x tile (ragged tail OK)
            pl.BlockSpec((E, H), lambda i: (0, 0)),                # W1 (resident)
            pl.BlockSpec((1, H), lambda i: (0, 0)),                # b1
            pl.BlockSpec((8, H), lambda i: (0, 0)),                # W2 row (replicated)
            pl.BlockSpec(memory_space=pltpu.MemorySpace.SMEM),     # b2 scalar
        ],
        out_specs=pl.BlockSpec((1, tile_n), lambda i: (0, i)),     # lane-dense row
    )

    out_row = pl.pallas_call(
        edge_mlp_kernel,
        out_shape=jax.ShapeDtypeStruct((1, N), jnp.float32),
        grid_spec=grid_spec,
        compiler_params=pltpu.CompilerParams(**compiler_kwargs),
        cost_estimate=cost,
    )(x, w1, b1, w2_rep, b2)

    # (1, N) lane-dense slab -> (N, 1) column, matching the PyTorch output shape.
    return out_row.reshape(N, 1)


# ----------------------------------------------------------------------------
# Deterministic parameter init (mirrors nn.Linear's shapes; values synthetic)
# ----------------------------------------------------------------------------
def init_params(key, node_embedding_dim):
    E = 2 * node_embedding_dim          # edge_embedding_dim
    H = E // 2                          # hidden dim
    k1, k2, k3, k4 = jax.random.split(key, 4)
    # PyTorch Linear default: U(-1/sqrt(fan_in), 1/sqrt(fan_in))
    lim1 = 1.0 / (E ** 0.5)
    lim2 = 1.0 / (H ** 0.5)
    w1 = jax.random.uniform(k1, (E, H), jnp.float32, -lim1, lim1)   # [in, out]
    b1 = jax.random.uniform(k2, (1, H), jnp.float32, -lim1, lim1)
    w2 = jax.random.uniform(k3, (1, H), jnp.float32, -lim2, lim2)   # PyTorch [out, in]
    b2 = jax.random.uniform(k4, (1,), jnp.float32, -lim2, lim2)
    return {"w1": w1, "b1": b1, "w2": w2, "b2": b2}


# ----------------------------------------------------------------------------
# Main
# ----------------------------------------------------------------------------
if __name__ == "__main__":
    node_embedding_dim = 32             # -> edge_embedding_dim = 64, hidden = 32
    E = 2 * node_embedding_dim
    N = 300                             # not a multiple of 128: exercises the ragged tail

    key = jax.random.PRNGKey(0)
    k_params, k_x = jax.random.split(key)
    params = init_params(k_params, node_embedding_dim)
    edge_embeddings = jax.random.normal(k_x, (N, E), jnp.float32)

    # Pure-JAX reference (same math as the PyTorch module).
    ref = jax.nn.sigmoid(
        jnp.maximum(edge_embeddings @ params["w1"] + params["b1"], 0.0)
        @ params["w2"].T
        + params["b2"]
    )

    # 1) f32 path, auto-chosen tile (single ragged block here).
    out = jax.block_until_ready(edge_classifier_forward(edge_embeddings, params))
    assert out.shape == (N, 1)
    assert jnp.allclose(out, ref, atol=1e-5, rtol=1e-5)

    # 2) f32 path, forced small tile -> multi-step grid with a ragged last block.
    out_tiled = jax.block_until_ready(
        edge_classifier_forward(edge_embeddings, params, tile_n=128)
    )
    assert out_tiled.shape == (N, 1)
    assert jnp.allclose(out_tiled, ref, atol=1e-5, rtol=1e-5)

    # 3) bf16 activations as produced by an upstream bf16 producer (no cast of x
    #    in the wrapper hot path; this astype is test scaffolding only).  bf16
    #    MXU operands lose ~3 decimal digits on the logits -> loose tolerance.
    out_bf16 = jax.block_until_ready(
        edge_classifier_forward(edge_embeddings.astype(jnp.bfloat16), params)
    )
    assert out_bf16.shape == (N, 1)
    assert jnp.allclose(out_bf16, ref, atol=2e-2, rtol=2e-2)

    print("KERNEL_OK")
</pallas_src>

<mosaic_0001>
module attributes {stable_mosaic.version = 11 : i64} {
  func.func @edge_mlp_kernel(%arg0: i32, %arg1: memref<384x64xf32, #tpu.memory_space<vmem>>, %arg2: memref<64x32xf32, #tpu.memory_space<vmem>>, %arg3: memref<1x32xf32, #tpu.memory_space<vmem>>, %arg4: memref<8x32xf32, #tpu.memory_space<vmem>>, %arg5: memref<1xf32, #tpu.memory_space<smem>>, %arg6: memref<1x384xf32, #tpu.memory_space<vmem>>) attributes {dimension_semantics = [#tpu.dimension_semantics<parallel>], iteration_bounds = array<i64: 1>, scalar_prefetch = 0 : i64, scratch_operands = 0 : i64, tpu.core_type = #tpu.core_type<tc>, window_params = [{transform_indices = @transform_0, window_bounds = array<i64: 384, 64>}, {pipeline_mode = #tpu.pipeline_mode<synchronous>, transform_indices = @transform_1, window_bounds = array<i64: 64, 32>}, {pipeline_mode = #tpu.pipeline_mode<synchronous>, transform_indices = @transform_2, window_bounds = array<i64: 1, 32>}, {pipeline_mode = #tpu.pipeline_mode<synchronous>, transform_indices = @transform_3, window_bounds = array<i64: 8, 32>}, {transform_indices = @transform_4, window_bounds = array<i64: 1>}, {transform_indices = @transform_5, window_bounds = array<i64: 1, 384>}]} {
    %c0 = arith.constant 0 : index
    %c0_0 = arith.constant 0 : index
    %0 = vector.load %arg1[%c0, %c0_0] : memref<384x64xf32, #tpu.memory_space<vmem>>, vector<384x64xf32>
    %c0_1 = arith.constant 0 : index
    %c0_2 = arith.constant 0 : index
    %1 = vector.load %arg2[%c0_1, %c0_2] : memref<64x32xf32, #tpu.memory_space<vmem>>, vector<64x32xf32>
    %cst = arith.constant dense<0.000000e+00> : vector<384x32xf32>
    %2 = tpu.matmul %0, %1, %cst {dimension_numbers = #tpu.dot_dimension_numbers<[1], [0], [0], [1], [0, 0, 1, 1], [], []>} : vector<384x64xf32>, vector<64x32xf32>, vector<384x32xf32> -> vector<384x32xf32>
    %c0_3 = arith.constant 0 : index
    %c0_4 = arith.constant 0 : index
    %3 = vector.load %arg3[%c0_3, %c0_4] : memref<1x32xf32, #tpu.memory_space<vmem>>, vector<1x32xf32>
    %4 = vector.broadcast %3 : vector<1x32xf32> to vector<384x32xf32>
    %5 = arith.addf %2, %4 : vector<384x32xf32>
    %cst_5 = arith.constant 0.000000e+00 : f32
    %6 = vector.broadcast %cst_5 : f32 to vector<384x32xf32>
    %7 = arith.maximumf %5, %6 : vector<384x32xf32>
    %c0_6 = arith.constant 0 : index
    %c0_7 = arith.constant 0 : index
    %8 = vector.load %arg4[%c0_6, %c0_7] : memref<8x32xf32, #tpu.memory_space<vmem>>, vector<8x32xf32>
    %cst_8 = arith.constant dense<0.000000e+00> : vector<8x384xf32>
    %9 = tpu.matmul %8, %7, %cst_8 {dimension_numbers = #tpu.dot_dimension_numbers<[1], [1], [0], [0], [0, 0, 1, 0], [], []>} : vector<8x32xf32>, vector<384x32xf32>, vector<8x384xf32> -> vector<8x384xf32>
    %10 = vector.extract_strided_slice %9 {offsets = [0, 0], sizes = [1, 384], strides = [1, 1]} : vector<8x384xf32> to vector<1x384xf32>
    %c0_9 = arith.constant 0 : index
    %11 = memref.load %arg5[%c0_9] : memref<1xf32, #tpu.memory_space<smem>>
    %12 = vector.broadcast %11 : f32 to vector<1x384xf32>
    %13 = arith.addf %10, %12 : vector<1x384xf32>
    %14 = arith.negf %13 : vector<1x384xf32>
    %15 = math.exp %14 : vector<1x384xf32>
    %cst_10 = arith.constant 1.000000e+00 : f32
    %16 = vector.broadcast %cst_10 : f32 to vector<1x384xf32>
    %17 = arith.addf %16, %15 : vector<1x384xf32>
    %18 = arith.divf %16, %17 : vector<1x384xf32>
    %c0_11 = arith.constant 0 : index
    %c0_12 = arith.constant 0 : index
    %19 = vector.load %arg6[%c0_11, %c0_12] : memref<1x384xf32, #tpu.memory_space<vmem>>, vector<1x384xf32>
    tpu.vector_store %arg6[%c0_11, %c0_12], %18 {strides = array<i32>} : memref<1x384xf32, #tpu.memory_space<vmem>>, vector<1x384xf32>,
    return
  }
  func.func @transform_0(%arg0: i32) -> (i32, i32) {
    %c0_i32 = arith.constant 0 : i32
    %c0_i32_0 = arith.constant 0 : i32
    return %arg0, %c0_i32 : i32, i32
  }
  func.func @transform_1(%arg0: i32) -> (i32, i32) {
    %c0_i32 = arith.constant 0 : i32
    %c0_i32_0 = arith.constant 0 : i32
    %c0_i32_1 = arith.constant 0 : i32
    return %c0_i32, %c0_i32_0 : i32, i32
  }
  func.func @transform_2(%arg0: i32) -> (i32, i32) {
    %c0_i32 = arith.constant 0 : i32
    %c0_i32_0 = arith.constant 0 : i32
    %c0_i32_1 = arith.constant 0 : i32
    return %c0_i32, %c0_i32_0 : i32, i32
  }
  func.func @transform_3(%arg0: i32) -> (i32, i32) {
    %c0_i32 = arith.constant 0 : i32
    %c0_i32_0 = arith.constant 0 : i32
    %c0_i32_1 = arith.constant 0 : i32
    return %c0_i32, %c0_i32_0 : i32, i32
  }
  func.func @transform_4(%arg0: i32) -> i32 {
    %c0_i32 = arith.constant 0 : i32
    %c0_i32_0 = arith.constant 0 : i32
    return %c0_i32 : i32
  }
  func.func @transform_5(%arg0: i32) -> (i32, i32) {
    %c0_i32 = arith.constant 0 : i32
    %c0_i32_0 = arith.constant 0 : i32
    return %c0_i32, %arg0 : i32, i32
  }
}

</mosaic_0001>

<llo_original>
// kernel: tpu_custom_call.1
$region0: #{tpu_custom_call.1}
  #allocation0 [shape = 'u32[]', space=smem, size = 0x4, offset = 0x4, fixed_abs, tag = 'smem constant byte address 0x4 - core index']
  #allocation1 [shape = 'u32[144,128]{1,0:T(1,128)}', space=vmem, size = 0x12000, scoped, tag = 'internal scratch']
  #allocation2 [shape = 'f32[1]{0:T(128)S(6)}', space=smem, size = 0x200, scoped, tag = 'scoped memory for tpu_custom_call.1']
  %s0 = inlined_call_operand.vmem [shape: f32[300,64], index: 0, kind: input, shape index: {}]
  %s1 = inlined_call_operand.vmem [shape: f32[64,32], index: 1, kind: input, shape index: {}]
  %s2 = inlined_call_operand.vmem [shape: f32[1,32], index: 2, kind: input, shape index: {}]
  %s3 = inlined_call_operand.vmem [shape: f32[8,32], index: 3, kind: input, shape index: {}]
  %s4 = inlined_call_operand.<no memory space> [shape: f32[1], index: 4, kind: input, shape index: {}]
  %s5 = inlined_call_operand.hbm [shape: f32[1,300], index: 5, kind: output, shape index: {}]
  %s6 = sld [smem:[#allocation0]]
  $region30: #{tpu_custom_call.1} parent=0
    _
  %s8 = ssub.s32 1, %s6
  %s9 = scalar_select 0, %s8, %s6
  %10 = sst [smem:[#allocation2]] %s4
  $region1: #{tpu_custom_call.1} parent=0
    #allocation3 [shape = 'u8[1536]{0}', space=vmem, size = 0x800, scoped, tag = 'output window, operand 0, single buffered']
    #allocation4 [shape = 's32[1]{0}', space=sflag, size = 0x4, scoped, tag = 'scoped memory for tpu_custom_call.1']
    %11 = vsyncpa [#allocation4], 0
    // Predicated region
    $region2: #{tpu_custom_call.1} parent=1 // pred_check
      _
    $region3: #{tpu_custom_call.1} parent=1 // pred_check_branch
      %13 = sbr.rel (0) target = $region5
    $region4: #{tpu_custom_call.1} parent=1 // pred_region
      _
    $region5: #{tpu_custom_call.1} parent=1 // pred_fallthru
      _
    // Predicated region
    $region6: #{tpu_custom_call.1} parent=1 // pred_check
      _
    $region7: #{tpu_custom_call.1} parent=1 // pred_check_branch
      %15 = sbr.rel (0) target = $region9
    $region8: #{tpu_custom_call.1} parent=1 // pred_region
      _
    $region9: #{tpu_custom_call.1} parent=1 // pred_fallthru
      _
    // Predicated region
    $region10: #{tpu_custom_call.1} parent=1 // pred_check
      _
    $region11: #{tpu_custom_call.1} parent=1 // pred_check_branch
      %17 = sbr.rel (0) target = $region13
    $region12: #{tpu_custom_call.1} parent=1 // pred_region
      _
    $region13: #{tpu_custom_call.1} parent=1 // pred_fallthru
      _
    // Predicated region
    $region14: #{tpu_custom_call.1} parent=1 // pred_check
      _
    $region15: #{tpu_custom_call.1} parent=1 // pred_check_branch
      %19 = sbr.rel (0) target = $region17
    $region16: #{tpu_custom_call.1} parent=1 // pred_region
      _
    $region17: #{tpu_custom_call.1} parent=1 // pred_fallthru
      _
    // Predicated region
    $region18: #{tpu_custom_call.1} parent=1 // pred_check
      _
    $region19: #{tpu_custom_call.1} parent=1 // pred_check_branch
      %21 = sbr.rel (0) target = $region21
    $region20: #{tpu_custom_call.1} parent=1 // pred_region
      _
    $region21: #{tpu_custom_call.1} parent=1 // pred_fallthru
      _
    %v22 = vld [vmem:[%s0] sm:$0xff]
    %v23 = vld [vmem:[%s0 + $0x8] sm:$0xff]
    %v24 = vld [vmem:[%s0 + $0x10] sm:$0xff]
    %v25 = vld [vmem:[%s0 + $0x18] sm:$0xff]
    %v26 = vld [vmem:[%s0 + $0x20] sm:$0xff]
    %v27 = vld [vmem:[%s0 + $0x28] sm:$0xff]
    %v28 = vld [vmem:[%s0 + $0x30] sm:$0xff]
    %v29 = vld [vmem:[%s0 + $0x38] sm:$0xff]
    %v30 = vld [vmem:[%s0 + $0x40] sm:$0xff]
    %v31 = vld [vmem:[%s0 + $0x48] sm:$0xff]
    %v32 = vld [vmem:[%s0 + $0x50] sm:$0xff]
    %v33 = vld [vmem:[%s0 + $0x58] sm:$0xff]
    %v34 = vld [vmem:[%s0 + $0x60] sm:$0xff]
    %v35 = vld [vmem:[%s0 + $0x68] sm:$0xff]
    %v36 = vld [vmem:[%s0 + $0x70] sm:$0xff]
    %v37 = vld [vmem:[%s0 + $0x78] sm:$0xff]
    %v38 = vld [vmem:[%s0 + $0x80] sm:$0xff]
    %v39 = vld [vmem:[%s0 + $0x88] sm:$0xff]
    %v40 = vld [vmem:[%s0 + $0x90] sm:$0xff]
    %v41 = vld [vmem:[%s0 + $0x98] sm:$0xff]
    %v42 = vld [vmem:[%s0 + $0xa0] sm:$0xff]
    %v43 = vld [vmem:[%s0 + $0xa8] sm:$0xff]
    %v44 = vld [vmem:[%s0 + $0xb0] sm:$0xff]
    %v45 = vld [vmem:[%s0 + $0xb8] sm:$0xff]
    %v46 = vld [vmem:[%s0 + $0xc0] sm:$0xff]
    %v47 = vld [vmem:[%s0 + $0xc8] sm:$0xff]
    %v48 = vld [vmem:[%s0 + $0xd0] sm:$0xff]
    %v49 = vld [vmem:[%s0 + $0xd8] sm:$0xff]
    %v50 = vld [vmem:[%s0 + $0xe0] sm:$0xff]
    %v51 = vld [vmem:[%s0 + $0xe8] sm:$0xff]
    %v52 = vld [vmem:[%s0 + $0xf0] sm:$0xff]
    %v53 = vld [vmem:[%s0 + $0xf8] sm:$0xff]
    %v54 = vld [vmem:[%s0 + $0x100] sm:$0xff]
    %v55 = vld [vmem:[%s0 + $0x108] sm:$0xff]
    %v56 = vld [vmem:[%s0 + $0x110] sm:$0xff]
    %v57 = vld [vmem:[%s0 + $0x118] sm:$0xff]
    %v58 = vld [vmem:[%s0 + $0x120] sm:$0xff]
    %v59 = vld [vmem:[%s0 + $0x128] sm:$0xff]
    %v60 = vld [vmem:[%s0 + $0x130] sm:$0xff]
    %v61 = vld [vmem:[%s0 + $0x138] sm:$0xff]
    %v62 = vld [vmem:[%s0 + $0x140] sm:$0xff]
    %v63 = vld [vmem:[%s0 + $0x148] sm:$0xff]
    %v64 = vld [vmem:[%s0 + $0x150] sm:$0xff]
    %v65 = vld [vmem:[%s0 + $0x158] sm:$0xff]
    %v66 = vld [vmem:[%s0 + $0x160] sm:$0xff]
    %v67 = vld [vmem:[%s0 + $0x168] sm:$0xff]
    %v68 = vld [vmem:[%s0 + $0x170] sm:$0xff]
    %v69 = vld [vmem:[%s0 + $0x178] sm:$0xff]
    %v70 = vld [vmem:[%s1] sm:$0xff]
    %v71 = vld [vmem:[%s1 + $0x8] sm:$0xff]
    %v72 = vld [vmem:[%s1 + $0x10] sm:$0xff]
    %v73 = vld [vmem:[%s1 + $0x18] sm:$0xff]
    %v74 = vld [vmem:[%s1 + $0x20] sm:$0xff]
    %v75 = vld [vmem:[%s1 + $0x28] sm:$0xff]
    %v76 = vld [vmem:[%s1 + $0x30] sm:$0xff]
    %v77 = vld [vmem:[%s1 + $0x38] sm:$0xff]
    %v78 = vld [vmem:[%s2] sm:$0x1]
    %v80 = vlaneseq
    %v81 = vshrl.u32 %v80, 7
    %v82 = vsub.s32 0, %v81
    %v83 = vrot.slane %v78, %v82
    %vm85 = vcmask 523264
    %v87 = vsel %vm85, %v22, 0
    %v90 = vsel %vm85, %v23, 0
    %v93 = vsel %vm85, %v24, 0
    %v96 = vsel %vm85, %v25, 0
    %v99 = vsel %vm85, %v26, 0
    %v102 = vsel %vm85, %v27, 0
    %v105 = vsel %vm85, %v28, 0
    %v108 = vsel %vm85, %v29, 0
    %v111 = vsel %vm85, %v30, 0
    %v114 = vsel %vm85, %v31, 0
    %v117 = vsel %vm85, %v32, 0
    %v120 = vsel %vm85, %v33, 0
    %v123 = vsel %vm85, %v34, 0
    %v126 = vsel %vm85, %v35, 0
    %v129 = vsel %vm85, %v36, 0
    %v132 = vsel %vm85, %v37, 0
    %v135 = vsel %vm85, %v38, 0
    %v138 = vsel %vm85, %v39, 0
    %v141 = vsel %vm85, %v40, 0
    %v144 = vsel %vm85, %v41, 0
    %v147 = vsel %vm85, %v42, 0
    %v150 = vsel %vm85, %v43, 0
    %v153 = vsel %vm85, %v44, 0
    %v156 = vsel %vm85, %v45, 0
    %v159 = vsel %vm85, %v46, 0
    %v162 = vsel %vm85, %v47, 0
    %v165 = vsel %vm85, %v48, 0
    %v168 = vsel %vm85, %v49, 0
    %v171 = vsel %vm85, %v50, 0
    %v174 = vsel %vm85, %v51, 0
    %v177 = vsel %vm85, %v52, 0
    %v180 = vsel %vm85, %v53, 0
    %v183 = vsel %vm85, %v54, 0
    %v186 = vsel %vm85, %v55, 0
    %v189 = vsel %vm85, %v56, 0
    %v192 = vsel %vm85, %v57, 0
    %v195 = vsel %vm85, %v58, 0
    %v198 = vsel %vm85, %v59, 0
    %v201 = vsel %vm85, %v60, 0
    %v204 = vsel %vm85, %v61, 0
    %v207 = vsel %vm85, %v62, 0
    %v210 = vsel %vm85, %v63, 0
    %v213 = vsel %vm85, %v64, 0
    %v216 = vsel %vm85, %v65, 0
    %v219 = vsel %vm85, %v66, 0
    %v222 = vsel %vm85, %v67, 0
    %v225 = vsel %vm85, %v68, 0
    %v228 = vsel %vm85, %v69, 0
    %230 = vmatprep.subr.mxu0 0.0
    %231 = vmatpush1.msra.mxu0 %v70
    %232 = vmatprep.subr.mxu0 0.0
    %233 = vmatpush1.msra.mxu0 %v71
    %234 = vmatprep.subr.mxu0 0.0
    %235 = vmatpush1.msra.mxu0 %v72
    %236 = vmatprep.subr.mxu0 0.0
    %237 = vmatpush1.msra.mxu0 %v73
    %238 = vmatprep.subr.mxu0 0.0
    %239 = vmatpush1.msra.mxu0 %v74
    %240 = vmatprep.subr.mxu0 0.0
    %241 = vmatpush1.msra.mxu0 %v75
    %242 = vmatprep.subr.mxu0 0.0
    %243 = vmatpush1.msra.mxu0 %v76
    %244 = vmatprep.subr.mxu0 0.0
    %245 = vmatpush1.msra.mxu0 %v77
    %246 = vmatprep.subr.mxu0 0.0
    %247 = vmatpush1.msra.mxu0 0.0
    %248 = vmatprep.subr.mxu0 0.0
    %249 = vmatpush1.msra.mxu0 0.0
    %250 = vmatprep.subr.mxu0 0.0
    %251 = vmatpush1.msra.mxu0 0.0
    %252 = vmatprep.subr.mxu0 0.0
    %253 = vmatpush1.msra.mxu0 0.0
    %254 = vmatprep.subr.mxu0 0.0
    %255 = vmatpush1.msra.mxu0 0.0
    %256 = vmatprep.subr.mxu0 0.0
    %257 = vmatpush1.msra.mxu0 0.0
    %258 = vmatprep.subr.mxu0 0.0
    %259 = vmatpush1.msra.mxu0 0.0
    %260 = vmatprep.subr.mxu0 0.0
    %261 = vmatpush1.msra.mxu0 0.0
    %262 = vmatprep.subr.mxu0 0.0
    %263 = vmatpush1.msra.mxu0 0.0
    %264 = vmatprep.subr.mxu0 0.0
    %265 = vmatpush1.msra.mxu0 0.0
    %266 = vmatprep.subr.mxu0 0.0
    %267 = vmatpush1.msra.mxu0 0.0
    %268 = vmatprep.subr.mxu0 0.0
    %269 = vmatpush1.msra.mxu0 0.0
    %270 = vmatprep.subr.mxu0 0.0
    %271 = vmatpush1.msra.mxu0 0.0
    %272 = vmatprep.subr.mxu0 0.0
    %273 = vmatpush1.msra.mxu0 0.0
    %274 = vmatprep.subr.mxu0 0.0
    %275 = vmatpush1.msra.mxu0 0.0
    %276 = vmatprep.subr.mxu0 0.0
    %277 = vmatpush1.msra.mxu0 0.0
    %278 = vmatprep.subr.mxu0 0.0
    %279 = vmatpush1.msra.mxu0 0.0
    %280 = vmatprep.subr.mxu0 0.0
    %281 = vmatpush1.msra.mxu0 0.0
    %282 = vmatprep.subr.mxu0 0.0
    %283 = vmatpush1.msra.mxu0 0.0
    %284 = vmatprep.subr.mxu0 0.0
    %285 = vmatpush1.msra.mxu0 0.0
    %286 = vmatprep.subr.mxu0 0.0
    %287 = vmatpush1.msra.mxu0 0.0
    %288 = vmatprep.subr.mxu0 0.0
    %289 = vmatpush1.msra.mxu0 0.0
    %290 = vmatprep.subr.mxu0 0.0
    %291 = vmatpush1.msra.mxu0 0.0
    %292 = vmatprep.subr.mxu0 0.0
    %293 = vmatpush1.msra.mxu0 0.0
    %294 = vmatprep.mubr.f32.mxu0 0.0
    %295 = vmatmul.mubr.f32.gmra.mrb[0].mxu0 %v87
    %v296 = vpop.f32.mrb[0].mxu0
    %v297 = vadd.f32 %v83, %v296
    %v298 = vpop.f32.mrb[0].mxu0
    %299 = vmatprep.mubr.f32.mxu0 0.0
    %300 = vmatmul.mubr.f32.gmra.mrb[0].mxu0 %v90
    %v301 = vpop.f32.mrb[0].mxu0
    %v302 = vadd.f32 %v83, %v301
    %v303 = vpop.f32.mrb[0].mxu0
    %304 = vmatprep.mubr.f32.mxu0 0.0
    %305 = vmatmul.mubr.f32.gmra.mrb[0].mxu0 %v93
    %v306 = vpop.f32.mrb[0].mxu0
    %v307 = vadd.f32 %v83, %v306
    %v308 = vpop.f32.mrb[0].mxu0
    %309 = vmatprep.mubr.f32.mxu0 0.0
    %310 = vmatmul.mubr.f32.gmra.mrb[0].mxu0 %v96
    %v311 = vpop.f32.mrb[0].mxu0
    %v312 = vadd.f32 %v83, %v311
    %v313 = vpop.f32.mrb[0].mxu0
    %314 = vmatprep.mubr.f32.mxu0 0.0
    %315 = vmatmul.mubr.f32.gmra.mrb[0].mxu0 %v99
    %v316 = vpop.f32.mrb[0].mxu0
    %v317 = vadd.f32 %v83, %v316
    %v318 = vpop.f32.mrb[0].mxu0
    %319 = vmatprep.mubr.f32.mxu0 0.0
    %320 = vmatmul.mubr.f32.gmra.mrb[0].mxu0 %v102
    %v321 = vpop.f32.mrb[0].mxu0
    %v322 = vadd.f32 %v83, %v321
    %v323 = vpop.f32.mrb[0].mxu0
    %324 = vmatprep.mubr.f32.mxu0 0.0
    %325 = vmatmul.mubr.f32.gmra.mrb[0].mxu0 %v105
    %v326 = vpop.f32.mrb[0].mxu0
    %v327 = vadd.f32 %v83, %v326
    %v328 = vpop.f32.mrb[0].mxu0
    %329 = vmatprep.mubr.f32.mxu0 0.0
    %330 = vmatmul.mubr.f32.gmra.mrb[0].mxu0 %v108
    %v331 = vpop.f32.mrb[0].mxu0
    %v332 = vadd.f32 %v83, %v331
    %v333 = vpop.f32.mrb[0].mxu0
    %334 = vmatprep.mubr.f32.mxu0 0.0
    %335 = vmatmul.mubr.f32.gmra.mrb[0].mxu0 %v111
    %v336 = vpop.f32.mrb[0].mxu0
    %v337 = vadd.f32 %v83, %v336
    %v338 = vpop.f32.mrb[0].mxu0
    %339 = vmatprep.mubr.f32.mxu0 0.0
    %340 = vmatmul.mubr.f32.gmra.mrb[0].mxu0 %v114
    %v341 = vpop.f32.mrb[0].mxu0
    %v342 = vadd.f32 %v83, %v341
    %v343 = vpop.f32.mrb[0].mxu0
    %344 = vmatprep.mubr.f32.mxu0 0.0
    %345 = vmatmul.mubr.f32.gmra.mrb[0].mxu0 %v117
    %v346 = vpop.f32.mrb[0].mxu0
    %v347 = vadd.f32 %v83, %v346
    %v348 = vpop.f32.mrb[0].mxu0
    %349 = vmatprep.mubr.f32.mxu0 0.0
    %350 = vmatmul.mubr.f32.gmra.mrb[0].mxu0 %v120
    %v351 = vpop.f32.mrb[0].mxu0
    %v352 = vadd.f32 %v83, %v351
    %v353 = vpop.f32.mrb[0].mxu0
    %354 = vmatprep.mubr.f32.mxu0 0.0
    %355 = vmatmul.mubr.f32.gmra.mrb[0].mxu0 %v123
    %v356 = vpop.f32.mrb[0].mxu0
    %v357 = vadd.f32 %v83, %v356
    %v358 = vpop.f32.mrb[0].mxu0
    %359 = vmatprep.mubr.f32.mxu0 0.0
    %360 = vmatmul.mubr.f32.gmra.mrb[0].mxu0 %v126
    %v361 = vpop.f32.mrb[0].mxu0
    %v362 = vadd.f32 %v83, %v361
    %v363 = vpop.f32.mrb[0].mxu0
    %364 = vmatprep.mubr.f32.mxu0 0.0
    %365 = vmatmul.mubr.f32.gmra.mrb[0].mxu0 %v129
    %v366 = vpop.f32.mrb[0].mxu0
    %v367 = vadd.f32 %v83, %v366
    %v368 = vpop.f32.mrb[0].mxu0
    %369 = vmatprep.mubr.f32.mxu0 0.0
    %370 = vmatmul.mubr.f32.gmra.mrb[0].mxu0 %v132
    %v371 = vpop.f32.mrb[0].mxu0
    %v372 = vadd.f32 %v83, %v371
    %v373 = vpop.f32.mrb[0].mxu0
    %374 = vmatprep.mubr.f32.mxu0 0.0
    %375 = vmatmul.mubr.f32.gmra.mrb[0].mxu0 %v135
    %v376 = vpop.f32.mrb[0].mxu0
    %v377 = vadd.f32 %v83, %v376
    %v378 = vpop.f32.mrb[0].mxu0
    %379 = vmatprep.mubr.f32.mxu0 0.0
    %380 = vmatmul.mubr.f32.gmra.mrb[0].mxu0 %v138
    %v381 = vpop.f32.mrb[0].mxu0
    %v382 = vadd.f32 %v83, %v381
    %v383 = vpop.f32.mrb[0].mxu0
    %384 = vmatprep.mubr.f32.mxu0 0.0
    %385 = vmatmul.mubr.f32.gmra.mrb[0].mxu0 %v141
    %v386 = vpop.f32.mrb[0].mxu0
    %v387 = vadd.f32 %v83, %v386
    %v388 = vpop.f32.mrb[0].mxu0
    %389 = vmatprep.mubr.f32.mxu0 0.0
    %390 = vmatmul.mubr.f32.gmra.mrb[0].mxu0 %v144
    %v391 = vpop.f32.mrb[0].mxu0
    %v392 = vadd.f32 %v83, %v391
    %v393 = vpop.f32.mrb[0].mxu0
    %394 = vmatprep.mubr.f32.mxu0 0.0
    %395 = vmatmul.mubr.f32.gmra.mrb[0].mxu0 %v147
    %v396 = vpop.f32.mrb[0].mxu0
    %v397 = vadd.f32 %v83, %v396
    %v398 = vpop.f32.mrb[0].mxu0
    %399 = vmatprep.mubr.f32.mxu0 0.0
    %400 = vmatmul.mubr.f32.gmra.mrb[0].mxu0 %v150
    %v401 = vpop.f32.mrb[0].mxu0
    %v402 = vadd.f32 %v83, %v401
    %v403 = vpop.f32.mrb[0].mxu0
    %404 = vmatprep.mubr.f32.mxu0 0.0
    %405 = vmatmul.mubr.f32.gmra.mrb[0].mxu0 %v153
    %v406 = vpop.f32.mrb[0].mxu0
    %v407 = vadd.f32 %v83, %v406
    %v408 = vpop.f32.mrb[0].mxu0
    %409 = vmatprep.mubr.f32.mxu0 0.0
    %410 = vmatmul.mubr.f32.gmra.mrb[0].mxu0 %v156
    %v411 = vpop.f32.mrb[0].mxu0
    %v412 = vadd.f32 %v83, %v411
    %v413 = vpop.f32.mrb[0].mxu0
    %414 = vmatprep.mubr.f32.mxu0 0.0
    %415 = vmatmul.mubr.f32.gmra.mrb[0].mxu0 %v159
    %v416 = vpop.f32.mrb[0].mxu0
    %v417 = vadd.f32 %v83, %v416
    %v418 = vpop.f32.mrb[0].mxu0
    %419 = vmatprep.mubr.f32.mxu0 0.0
    %420 = vmatmul.mubr.f32.gmra.mrb[0].mxu0 %v162
    %v421 = vpop.f32.mrb[0].mxu0
    %v422 = vadd.f32 %v83, %v421
    %v423 = vpop.f32.mrb[0].mxu0
    %424 = vmatprep.mubr.f32.mxu0 0.0
    %425 = vmatmul.mubr.f32.gmra.mrb[0].mxu0 %v165
    %v426 = vpop.f32.mrb[0].mxu0
    %v427 = vadd.f32 %v83, %v426
    %v428 = vpop.f32.mrb[0].mxu0
    %429 = vmatprep.mubr.f32.mxu0 0.0
    %430 = vmatmul.mubr.f32.gmra.mrb[0].mxu0 %v168
    %v431 = vpop.f32.mrb[0].mxu0
    %v432 = vadd.f32 %v83, %v431
    %v433 = vpop.f32.mrb[0].mxu0
    %434 = vmatprep.mubr.f32.mxu0 0.0
    %435 = vmatmul.mubr.f32.gmra.mrb[0].mxu0 %v171
    %v436 = vpop.f32.mrb[0].mxu0
    %v437 = vadd.f32 %v83, %v436
    %v438 = vpop.f32.mrb[0].mxu0
    %439 = vmatprep.mubr.f32.mxu0 0.0
    %440 = vmatmul.mubr.f32.gmra.mrb[0].mxu0 %v174
    %v441 = vpop.f32.mrb[0].mxu0
    %v442 = vadd.f32 %v83, %v441
    %v443 = vpop.f32.mrb[0].mxu0
    %444 = vmatprep.mubr.f32.mxu0 0.0
    %445 = vmatmul.mubr.f32.gmra.mrb[0].mxu0 %v177
    %v446 = vpop.f32.mrb[0].mxu0
    %v447 = vadd.f32 %v83, %v446
    %v448 = vpop.f32.mrb[0].mxu0
    %449 = vmatprep.mubr.f32.mxu0 0.0
    %450 = vmatmul.mubr.f32.gmra.mrb[0].mxu0 %v180
    %v451 = vpop.f32.mrb[0].mxu0
    %v452 = vadd.f32 %v83, %v451
    %v453 = vpop.f32.mrb[0].mxu0
    %454 = vmatprep.mubr.f32.mxu0 0.0
    %455 = vmatmul.mubr.f32.gmra.mrb[0].mxu0 %v183
    %v456 = vpop.f32.mrb[0].mxu0
    %v457 = vadd.f32 %v83, %v456
    %v458 = vpop.f32.mrb[0].mxu0
    %459 = vmatprep.mubr.f32.mxu0 0.0
    %460 = vmatmul.mubr.f32.gmra.mrb[0].mxu0 %v186
    %v461 = vpop.f32.mrb[0].mxu0
    %v462 = vadd.f32 %v83, %v461
    %v463 = vpop.f32.mrb[0].mxu0
    %464 = vmatprep.mubr.f32.mxu0 0.0
    %465 = vmatmul.mubr.f32.gmra.mrb[0].mxu0 %v189
    %v466 = vpop.f32.mrb[0].mxu0
    %v467 = vadd.f32 %v83, %v466
    %v468 = vpop.f32.mrb[0].mxu0
    %469 = vmatprep.mubr.f32.mxu0 0.0
    %470 = vmatmul.mubr.f32.gmra.mrb[0].mxu0 %v192
    %v471 = vpop.f32.mrb[0].mxu0
    %v472 = vadd.f32 %v83, %v471
    %v473 = vpop.f32.mrb[0].mxu0
    %474 = vmatprep.mubr.f32.mxu0 0.0
    %475 = vmatmul.mubr.f32.gmra.mrb[0].mxu0 %v195
    %v476 = vpop.f32.mrb[0].mxu0
    %v477 = vadd.f32 %v83, %v476
    %v478 = vpop.f32.mrb[0].mxu0
    %479 = vmatprep.mubr.f32.mxu0 0.0
    %480 = vmatmul.mubr.f32.gmra.mrb[0].mxu0 %v198
    %v481 = vpop.f32.mrb[0].mxu0
    %v482 = vadd.f32 %v83, %v481
    %v483 = vpop.f32.mrb[0].mxu0
    %484 = vmatprep.mubr.f32.mxu0 0.0
    %485 = vmatmul.mubr.f32.gmra.mrb[0].mxu0 %v201
    %v486 = vpop.f32.mrb[0].mxu0
    %v487 = vadd.f32 %v83, %v486
    %v488 = vpop.f32.mrb[0].mxu0
    %489 = vmatprep.mubr.f32.mxu0 0.0
    %490 = vmatmul.mubr.f32.gmra.mrb[0].mxu0 %v204
    %v491 = vpop.f32.mrb[0].mxu0
    %v492 = vadd.f32 %v83, %v491
    %v493 = vpop.f32.mrb[0].mxu0
    %494 = vmatprep.mubr.f32.mxu0 0.0
    %495 = vmatmul.mubr.f32.gmra.mrb[0].mxu0 %v207
    %v496 = vpop.f32.mrb[0].mxu0
    %v497 = vadd.f32 %v83, %v496
    %v498 = vpop.f32.mrb[0].mxu0
    %499 = vmatprep.mubr.f32.mxu0 0.0
    %500 = vmatmul.mubr.f32.gmra.mrb[0].mxu0 %v210
    %v501 = vpop.f32.mrb[0].mxu0
    %v502 = vadd.f32 %v83, %v501
    %v503 = vpop.f32.mrb[0].mxu0
    %504 = vmatprep.mubr.f32.mxu0 0.0
    %505 = vmatmul.mubr.f32.gmra.mrb[0].mxu0 %v213
    %v506 = vpop.f32.mrb[0].mxu0
    %v507 = vadd.f32 %v83, %v506
    %v508 = vpop.f32.mrb[0].mxu0
    %509 = vmatprep.mubr.f32.mxu0 0.0
    %510 = vmatmul.mubr.f32.gmra.mrb[0].mxu0 %v216
    %v511 = vpop.f32.mrb[0].mxu0
    %v512 = vadd.f32 %v83, %v511
    %v513 = vpop.f32.mrb[0].mxu0
    %514 = vmatprep.mubr.f32.mxu0 0.0
    %515 = vmatmul.mubr.f32.gmra.mrb[0].mxu0 %v219
    %v516 = vpop.f32.mrb[0].mxu0
    %v517 = vadd.f32 %v83, %v516
    %v518 = vpop.f32.mrb[0].mxu0
    %519 = vmatprep.mubr.f32.mxu0 0.0
    %520 = vmatmul.mubr.f32.gmra.mrb[0].mxu0 %v222
    %v521 = vpop.f32.mrb[0].mxu0
    %v522 = vadd.f32 %v83, %v521
    %v523 = vpop.f32.mrb[0].mxu0
    %524 = vmatprep.mubr.f32.mxu0 0.0
    %525 = vmatmul.mubr.f32.gmra.mrb[0].mxu0 %v225
    %v526 = vpop.f32.mrb[0].mxu0
    %v527 = vadd.f32 %v83, %v526
    %v528 = vpop.f32.mrb[0].mxu0
    %529 = vmatprep.mubr.f32.mxu0 0.0
    %530 = vmatmul.mubr.f32.gmra.mrb[0].mxu0 %v228
    %v531 = vpop.f32.mrb[0].mxu0
    %v532 = vadd.f32 %v83, %v531
    %v533 = vpop.f32.mrb[0].mxu0
    %534 = vdwg.mxu0
    %v535 = vmax.f32 %v297, 0.0
    %v536 = vmax.f32 %v302, 0.0
    %v537 = vmax.f32 %v307, 0.0
    %v538 = vmax.f32 %v312, 0.0
    %v539 = vmax.f32 %v317, 0.0
    %v540 = vmax.f32 %v322, 0.0
    %v541 = vmax.f32 %v327, 0.0
    %v542 = vmax.f32 %v332, 0.0
    %v543 = vmax.f32 %v337, 0.0
    %v544 = vmax.f32 %v342, 0.0
    %v545 = vmax.f32 %v347, 0.0
    %v546 = vmax.f32 %v352, 0.0
    %v547 = vmax.f32 %v357, 0.0
    %v548 = vmax.f32 %v362, 0.0
    %v549 = vmax.f32 %v367, 0.0
    %v550 = vmax.f32 %v372, 0.0
    %v551 = vmax.f32 %v377, 0.0
    %v552 = vmax.f32 %v382, 0.0
    %v553 = vmax.f32 %v387, 0.0
    %v554 = vmax.f32 %v392, 0.0
    %v555 = vmax.f32 %v397, 0.0
    %v556 = vmax.f32 %v402, 0.0
    %v557 = vmax.f32 %v407, 0.0
    %v558 = vmax.f32 %v412, 0.0
    %v559 = vmax.f32 %v417, 0.0
    %v560 = vmax.f32 %v422, 0.0
    %v561 = vmax.f32 %v427, 0.0
    %v562 = vmax.f32 %v432, 0.0
    %v563 = vmax.f32 %v437, 0.0
    %v564 = vmax.f32 %v442, 0.0
    %v565 = vmax.f32 %v447, 0.0
    %v566 = vmax.f32 %v452, 0.0
    %v567 = vmax.f32 %v457, 0.0
    %v568 = vmax.f32 %v462, 0.0
    %v569 = vmax.f32 %v467, 0.0
    %v570 = vmax.f32 %v472, 0.0
    %v571 = vmax.f32 %v477, 0.0
    %v572 = vmax.f32 %v482, 0.0
    %v573 = vmax.f32 %v487, 0.0
    %v574 = vmax.f32 %v492, 0.0
    %v575 = vmax.f32 %v497, 0.0
    %v576 = vmax.f32 %v502, 0.0
    %v577 = vmax.f32 %v507, 0.0
    %v578 = vmax.f32 %v512, 0.0
    %v579 = vmax.f32 %v517, 0.0
    %v580 = vmax.f32 %v522, 0.0
    %v581 = vmax.f32 %v527, 0.0
    %v582 = vmax.f32 %v532, 0.0
    %v583 = vld [vmem:[%s3] sm:$0xff]
    %vm584 = vcmask 261120
    %v586 = vsel %vm584, %v583, 0
    %v589 = vsel %vm584, %v535, 0
    %v592 = vsel %vm584, %v536, 0
    %v595 = vsel %vm584, %v537, 0
    %v598 = vsel %vm584, %v538, 0
    %v601 = vsel %vm584, %v539, 0
    %v604 = vsel %vm584, %v540, 0
    %v607 = vsel %vm584, %v541, 0
    %v610 = vsel %vm584, %v542, 0
    %v613 = vsel %vm584, %v543, 0
    %v616 = vsel %vm584, %v544, 0
    %v619 = vsel %vm584, %v545, 0
    %v622 = vsel %vm584, %v546, 0
    %v625 = vsel %vm584, %v547, 0
    %v628 = vsel %vm584, %v548, 0
    %v631 = vsel %vm584, %v549, 0
    %v634 = vsel %vm584, %v550, 0
    %v637 = vsel %vm584, %v551, 0
    %v640 = vsel %vm584, %v552, 0
    %v643 = vsel %vm584, %v553, 0
    %v646 = vsel %vm584, %v554, 0
    %v649 = vsel %vm584, %v555, 0
    %v652 = vsel %vm584, %v556, 0
    %v655 = vsel %vm584, %v557, 0
    %v658 = vsel %vm584, %v558, 0
    %v661 = vsel %vm584, %v559, 0
    %v664 = vsel %vm584, %v560, 0
    %v667 = vsel %vm584, %v561, 0
    %v670 = vsel %vm584, %v562, 0
    %v673 = vsel %vm584, %v563, 0
    %v676 = vsel %vm584, %v564, 0
    %v679 = vsel %vm584, %v565, 0
    %v682 = vsel %vm584, %v566, 0
    %v685 = vsel %vm584, %v567, 0
    %v688 = vsel %vm584, %v568, 0
    %v691 = vsel %vm584, %v569, 0
    %v694 = vsel %vm584, %v570, 0
    %v697 = vsel %vm584, %v571, 0
    %v700 = vsel %vm584, %v572, 0
    %v703 = vsel %vm584, %v573, 0
    %v706 = vsel %vm584, %v574, 0
    %v709 = vsel %vm584, %v575, 0
    %v712 = vsel %vm584, %v576, 0
    %v715 = vsel %vm584, %v577, 0
    %v718 = vsel %vm584, %v578, 0
    %v721 = vsel %vm584, %v579, 0
    %v724 = vsel %vm584, %v580, 0
    %v727 = vsel %vm584, %v581, 0
    %v730 = vsel %vm584, %v582, 0
    %732 = vmatprep.subr.mxu0 0.0
    %733 = vmatpush1.xpose.msra.mxu0 %v589
    %734 = vmatprep.subr.mxu0 0.0
    %735 = vmatpush1.xpose.msra.mxu0 %v592
    %736 = vmatprep.subr.mxu0 0.0
    %737 = vmatpush1.xpose.msra.mxu0 %v595
    %738 = vmatprep.subr.mxu0 0.0
    %739 = vmatpush1.xpose.msra.mxu0 %v598
    %740 = vmatprep.subr.mxu0 0.0
    %741 = vmatpush1.xpose.msra.mxu0 %v601
    %742 = vmatprep.subr.mxu0 0.0
    %743 = vmatpush1.xpose.msra.mxu0 %v604
    %744 = vmatprep.subr.mxu0 0.0
    %745 = vmatpush1.xpose.msra.mxu0 %v607
    %746 = vmatprep.subr.mxu0 0.0
    %747 = vmatpush1.xpose.msra.mxu0 %v610
    %748 = vmatprep.subr.mxu0 0.0
    %749 = vmatpush1.xpose.msra.mxu0 %v613
    %750 = vmatprep.subr.mxu0 0.0
    %751 = vmatpush1.xpose.msra.mxu0 %v616
    %752 = vmatprep.subr.mxu0 0.0
    %753 = vmatpush1.xpose.msra.mxu0 %v619
    %754 = vmatprep.subr.mxu0 0.0
    %755 = vmatpush1.xpose.msra.mxu0 %v622
    %756 = vmatprep.subr.mxu0 0.0
    %757 = vmatpush1.xpose.msra.mxu0 %v625
    %758 = vmatprep.subr.mxu0 0.0
    %759 = vmatpush1.xpose.msra.mxu0 %v628
    %760 = vmatprep.subr.mxu0 0.0
    %761 = vmatpush1.xpose.msra.mxu0 %v631
    %762 = vmatprep.subr.mxu0 0.0
    %763 = vmatpush1.xpose.msra.mxu0 %v634
    %764 = vmatprep.subr.mxu0 0.0
    %765 = vmatpush1.xpose.msra.mxu0 %v637
    %766 = vmatprep.subr.mxu0 0.0
    %767 = vmatpush1.xpose.msra.mxu0 %v640
    %768 = vmatprep.subr.mxu0 0.0
    %769 = vmatpush1.xpose.msra.mxu0 %v643
    %770 = vmatprep.subr.mxu0 0.0
    %771 = vmatpush1.xpose.msra.mxu0 %v646
    %772 = vmatprep.subr.mxu0 0.0
    %773 = vmatpush1.xpose.msra.mxu0 %v649
    %774 = vmatprep.subr.mxu0 0.0
    %775 = vmatpush1.xpose.msra.mxu0 %v652
    %776 = vmatprep.subr.mxu0 0.0
    %777 = vmatpush1.xpose.msra.mxu0 %v655
    %778 = vmatprep.subr.mxu0 0.0
    %779 = vmatpush1.xpose.msra.mxu0 %v658
    %780 = vmatprep.subr.mxu0 0.0
    %781 = vmatpush1.xpose.msra.mxu0 %v661
    %782 = vmatprep.subr.mxu0 0.0
    %783 = vmatpush1.xpose.msra.mxu0 %v664
    %784 = vmatprep.subr.mxu0 0.0
    %785 = vmatpush1.xpose.msra.mxu0 %v667
    %786 = vmatprep.subr.mxu0 0.0
    %787 = vmatpush1.xpose.msra.mxu0 %v670
    %788 = vmatprep.subr.mxu0 0.0
    %789 = vmatpush1.xpose.msra.mxu0 %v673
    %790 = vmatprep.subr.mxu0 0.0
    %791 = vmatpush1.xpose.msra.mxu0 %v676
    %792 = vmatprep.subr.mxu0 0.0
    %793 = vmatpush1.xpose.msra.mxu0 %v679
    %794 = vmatprep.subr.mxu0 0.0
    %795 = vmatpush1.xpose.msra.mxu0 %v682
    %796 = vmatprep.mubr.f32.mxu0 0.0
    %797 = vmatmul.mubr.f32.gmra.mrb[0].mxu0 %v586
    %v798 = vpop.f32.mrb[0].mxu0
    %v799 = vadd.f32 0.0, %v798
    %v800 = vpop.f32.mrb[0].mxu0
    %v801 = vadd.f32 0.0, %v800
    %802 = vdwg.mxu0
    %803 = vmatprep.subr.mxu0 0.0
    %804 = vmatpush1.xpose.msra.mxu0 %v685
    %805 = vmatprep.subr.mxu0 0.0
    %806 = vmatpush1.xpose.msra.mxu0 %v688
    %807 = vmatprep.subr.mxu0 0.0
    %808 = vmatpush1.xpose.msra.mxu0 %v691
    %809 = vmatprep.subr.mxu0 0.0
    %810 = vmatpush1.xpose.msra.mxu0 %v694
    %811 = vmatprep.subr.mxu0 0.0
    %812 = vmatpush1.xpose.msra.mxu0 %v697
    %813 = vmatprep.subr.mxu0 0.0
    %814 = vmatpush1.xpose.msra.mxu0 %v700
    %815 = vmatprep.subr.mxu0 0.0
    %816 = vmatpush1.xpose.msra.mxu0 %v703
    %817 = vmatprep.subr.mxu0 0.0
    %818 = vmatpush1.xpose.msra.mxu0 %v706
    %819 = vmatprep.subr.mxu0 0.0
    %820 = vmatpush1.xpose.msra.mxu0 %v709
    %821 = vmatprep.subr.mxu0 0.0
    %822 = vmatpush1.xpose.msra.mxu0 %v712
    %823 = vmatprep.subr.mxu0 0.0
    %824 = vmatpush1.xpose.msra.mxu0 %v715
    %825 = vmatprep.subr.mxu0 0.0
    %826 = vmatpush1.xpose.msra.mxu0 %v718
    %827 = vmatprep.subr.mxu0 0.0
    %828 = vmatpush1.xpose.msra.mxu0 %v721
    %829 = vmatprep.subr.mxu0 0.0
    %830 = vmatpush1.xpose.msra.mxu0 %v724
    %831 = vmatprep.subr.mxu0 0.0
    %832 = vmatpush1.xpose.msra.mxu0 %v727
    %833 = vmatprep.subr.mxu0 0.0
    %834 = vmatpush1.xpose.msra.mxu0 %v730
    %835 = vmatprep.subr.mxu0 0.0
    %836 = vmatpush1.xpose.msra.mxu0 0.0
    %837 = vmatprep.subr.mxu0 0.0
    %838 = vmatpush1.xpose.msra.mxu0 0.0
    %839 = vmatprep.subr.mxu0 0.0
    %840 = vmatpush1.xpose.msra.mxu0 0.0
    %841 = vmatprep.subr.mxu0 0.0
    %842 = vmatpush1.xpose.msra.mxu0 0.0
    %843 = vmatprep.subr.mxu0 0.0
    %844 = vmatpush1.xpose.msra.mxu0 0.0
    %845 = vmatprep.subr.mxu0 0.0
    %846 = vmatpush1.xpose.msra.mxu0 0.0
    %847 = vmatprep.subr.mxu0 0.0
    %848 = vmatpush1.xpose.msra.mxu0 0.0
    %849 = vmatprep.subr.mxu0 0.0
    %850 = vmatpush1.xpose.msra.mxu0 0.0
    %851 = vmatprep.subr.mxu0 0.0
    %852 = vmatpush1.xpose.msra.mxu0 0.0
    %853 = vmatprep.subr.mxu0 0.0
    %854 = vmatpush1.xpose.msra.mxu0 0.0
    %855 = vmatprep.subr.mxu0 0.0
    %856 = vmatpush1.xpose.msra.mxu0 0.0
    %857 = vmatprep.subr.mxu0 0.0
    %858 = vmatpush1.xpose.msra.mxu0 0.0
    %859 = vmatprep.subr.mxu0 0.0
    %860 = vmatpush1.xpose.msra.mxu0 0.0
    %861 = vmatprep.subr.mxu0 0.0
    %862 = vmatpush1.xpose.msra.mxu0 0.0
    %863 = vmatprep.subr.mxu0 0.0
    %864 = vmatpush1.xpose.msra.mxu0 0.0
    %865 = vmatprep.subr.mxu0 0.0
    %866 = vmatpush1.xpose.msra.mxu0 0.0
    %867 = vmatprep.mubr.f32.mxu0 0.0
    %868 = vmatmul.mubr.f32.gmra.mrb[0].mxu0 %v586
    %v869 = vpop.f32.mrb[0].mxu0
    %v870 = vadd.f32 0.0, %v869
    %v871 = vpop.f32.mrb[0].mxu0
    %872 = vdwg.mxu0
    %s873 = sld [smem:[#allocation2]]
    %v874 = vstv %s873
    %v875 = vadd.f32 %v799, %v874
    %v876 = vadd.f32 %v801, %v874
    %v877 = vadd.f32 %v870, %v874
    %v878 = vxor.u32 %v875, 2147483648
    %v879 = vxor.u32 %v876, 2147483648
    %v880 = vxor.u32 %v877, 2147483648
    %v881 = vmul.f32 %v878, 1.442695
    %v882 = vpow.pop %v881
    %v883 = vmul.f32 %v879, 1.442695
    %v884 = vpow.pop %v883
    %v885 = vmul.f32 %v880, 1.442695
    %v886 = vpow.pop %v885
    %v887 = vadd.f32 %v882, 1.0
    %v888 = vadd.f32 %v884, 1.0
    %v889 = vadd.f32 %v886, 1.0
    %v890 = vrcp.pop %v887
    %v891 = vmul.f32 1.0, %v890
    %v892 = vrcp.pop %v888
    %v893 = vmul.f32 1.0, %v892
    %v894 = vrcp.pop %v889
    %v895 = vmul.f32 1.0, %v894
    %v899 = vcombine.low %v891, %v893
    %v901 = vunpack.c.l.s4 1966171168
    %v902 = vunpack.c.0.s8 %v901
    %v903 = vlaneseq
    %v904 = vshrl.u32 %v903, 7
    %v905 = vsub.s32 %v902, %v904
    %v906 = vrot.slane %v899, %v905
    %v908 = vunpack.c.l.s4 1966171168
    %v909 = vunpack.c.0.s8 %v908
    %v910 = vlaneseq
    %v911 = vshrl.u32 %v910, 7
    %v912 = vsub.s32 %v909, %v911
    %v913 = vrot.slane %v895, %v912
    %v914 = vcombine.low %v906, %v913
    %v916 = vunpack.c.l.s4 1966171168
    %v917 = vunpack.c.0.s8 %v916
    %v918 = vlaneseq
    %v919 = vshrl.u32 %v918, 7
    %v920 = vsub.s32 %v917, %v919
    %v921 = vrot.slane %v914, %v920
    %v923 = vlaneseq
    %vm924 = vcmp.ge.s32.totalorder %v923, 0
    %vm925 = vcmp.lt.s32.totalorder %v923, 384
    %vm926 = vmand %vm924, %vm925
    %927 = vst.msk [vmem:[#allocation3] sm:$0x7] %vm926, %v921
    // Predicated region
    $region22: #{tpu_custom_call.1} parent=1 // pred_check
      _
    $region23: #{tpu_custom_call.1} parent=1 // pred_check_branch
      %929 = sbr.rel (0) target = $region25
    $region24: #{tpu_custom_call.1} parent=1 // pred_region
      %s931 = ssub.s32 48, 48
      %932 = vsyncadd [#allocation4], %s931
      %s934 = sshll.u32 [#allocation3], 4
      %s935 = int_to_ptr.vmem [resolvable:$true] %s934
      %937 = dma.vmem_to_hbm [thread:$0]  %s935, 48, %s5, [#allocation4]
    $region25: #{tpu_custom_call.1} parent=1 // pred_fallthru
      _
    // Predicated region
    $region26: #{tpu_custom_call.1} parent=1 // pred_check
      _
    $region27: #{tpu_custom_call.1} parent=1 // pred_check_branch
      %939 = sbr.rel (0) target = $region29
    $region28: #{tpu_custom_call.1} parent=1 // pred_region
      %940 = dma.done [#allocation4], 48
    $region29: #{tpu_custom_call.1} parent=1 // pred_fallthru
      _
    %941 = vsyncpa [#allocation4], 1

</llo_original>
